<compile_context>
chip_gen: v5e
topology: v5e:2x2
jax: 0.10.0
libtpu: 0.0.40
codegen_flags: <defaults>
</compile_context>

<pallas_src>
import functools
import math
from typing import Optional

import jax
import jax.numpy as jnp
from jax import lax
from jax.experimental import pallas as pl
from jax.experimental.pallas import tpu as pltpu


def _round_up(x: int, m: int) -> int:
    return (x + m - 1) // m * m


_LANES = 128
_TN_MAX = 8192  # max lanes per spatial tile (multiple of 128)


def _focal_sum_kernel(pred_ref, label_ref, out_ref, *, epsilon, steps, tn, n_valid):
    """One (rows, tn) spatial tile of the focal reduction.

    pred_ref : (rows, tn) probabilities in their native dtype (f32/bf16/f16).
    label_ref: (rows, tn) int8 {0,1} labels.
    out_ref  : (rows, 128) f32 lane-partial sums, resident across the k axis.
    """
    i = pl.program_id(0)  # spatial split (megacore axis)
    k = pl.program_id(1)  # step within split (reduction axis)

    @pl.when(k == 0)
    def _():
        out_ref[...] = jnp.zeros_like(out_ref)

    p = pred_ref[...].astype(jnp.float32)
    term = -(1.0 - p) ** 2 * jnp.log(p + epsilon)

    # Tail columns (past the real spatial extent) and label==0 voxels are
    # dropped with a select, so garbage in the out-of-bounds tile region
    # (possibly NaN/Inf after log) can never contaminate the sum.
    col0 = (i * steps + k) * tn
    lane = lax.broadcasted_iota(jnp.int32, p.shape, 1)
    keep = jnp.logical_and(label_ref[...] != 0, (col0 + lane) < n_valid)
    loss = jnp.where(keep, term, 0.0)

    # Fold tn lanes into 128-lane partial sums with vreg-aligned VPU adds
    # (tree order for ILP); the single cross-lane reduce is left to the JAX
    # epilogue so the XLU stays off the loop-carried path.
    parts = [loss[:, j * _LANES:(j + 1) * _LANES] for j in range(tn // _LANES)]
    while len(parts) > 1:
        nxt = [parts[a] + parts[a + 1] for a in range(0, len(parts) - 1, 2)]
        if len(parts) % 2:
            nxt.append(parts[-1])
        parts = nxt
    out_ref[...] += parts[0]


def _focal_channel_sums(pred2d: jax.Array,
                        label2d: jax.Array,
                        epsilon: float,
                        max_tile_lanes: Optional[int] = None) -> jax.Array:
    """pred2d (rows, n) native dtype, label2d (rows, n) int8 -> (rows,) f32 sums."""
    rows, n = pred2d.shape

    if n < _LANES:
        # Degenerate spatial extent — not worth a kernel launch.
        p = pred2d.astype(jnp.float32)
        term = -(1.0 - p) ** 2 * jnp.log(p + epsilon)
        return jnp.where(label2d != 0, term, 0.0).sum(axis=1)

    # Generation-aware sizing (v7x: 64 MiB VMEM per core; v5e/v6e: 128 MiB).
    try:
        vmem_cap = int(pltpu.get_tpu_info().vmem_capacity_bytes)
    except Exception:
        vmem_cap = 64 << 20  # conservative fallback

    rows_pad = _round_up(rows, 8)
    esize = jnp.dtype(pred2d.dtype).itemsize
    bytes_per_col = 2 * esize + 2 * 1 + 16  # dbl-buffered pred + label + f32 temps

    tn_max = max_tile_lanes if max_tile_lanes is not None else _TN_MAX
    tile_budget = max(1 << 20, (2 * vmem_cap) // 5)  # ~40% of VMEM capacity
    tn_cap = (tile_budget // (rows_pad * bytes_per_col)) // _LANES * _LANES
    tn_cap = max(_LANES, min(tn_max, tn_cap))

    # Leading "parallel" axis splits the spatial reduction in two so both
    # TensorCores can participate on megacore parts (harmless on 1-TC chips).
    # TODO(synk): confirm with an xprof trace that "parallel" actually shards
    # across both v7x cores; if not, switch this axis to pltpu.CORE_PARALLEL.
    num_splits = 2 if n >= 2 * _LANES else 1

    chunk = pl.cdiv(n, num_splits)
    steps = pl.cdiv(chunk, tn_cap)
    # Prefer >= 4 steps per split so the input DMAs have something to overlap.
    steps = min(max(steps, 4), pl.cdiv(chunk, _LANES))
    tn = _round_up(pl.cdiv(chunk, steps), _LANES)

    # Grid blocks may overrun the array; clamp their index (duplicate reads are
    # fully masked in-kernel via the global-column check, so they never count).
    last_blk = pl.cdiv(n, tn) - 1

    def in_idx(i, k):
        return (0, jnp.minimum(i * steps + k, last_blk))

    vmem_needed = (rows_pad * tn * bytes_per_col
                   + 2 * num_splits * rows_pad * _LANES * 4 + (2 << 20))
    vmem_limit = int(min(max(vmem_needed, 32 << 20),
                         min((3 * vmem_cap) // 4, 64 << 20)))

    kernel = functools.partial(_focal_sum_kernel, epsilon=epsilon,
                               steps=steps, tn=tn, n_valid=n)
    out = pl.pallas_call(
        kernel,
        out_shape=jax.ShapeDtypeStruct((rows, num_splits * _LANES), jnp.float32),
        grid_spec=pltpu.PrefetchScalarGridSpec(
            num_scalar_prefetch=0,
            grid=(num_splits, steps),
            in_specs=[
                pl.BlockSpec((rows, tn), in_idx),
                pl.BlockSpec((rows, tn), in_idx),
            ],
            out_specs=pl.BlockSpec((rows, _LANES), lambda i, k: (0, i)),
        ),
        compiler_params=pltpu.CompilerParams(
            dimension_semantics=("parallel", "arbitrary"),
            vmem_limit_bytes=vmem_limit,
        ),
    )(pred2d, label2d)

    # One tiny cross-lane reduce per row, done in plain JAX.
    return out.sum(axis=1)


def focal_loss(pred: jax.Array,
               label: jax.Array,
               include_background: bool = True,
               mask: Optional[jax.Array] = None,
               weights: Optional[jax.Array] = None,
               reduce_channels: bool = True,
               reduction: str = "mean",
               sc_channel: Optional[int] = None,
               epsilon: float = 1e-6,
               max_tile_lanes: Optional[int] = None) -> jax.Array:
    """JAX/Pallas port of mymi.losses.focal.FocalLoss.forward."""
    if label.dtype != jnp.bool_:
        raise ValueError(f"FocalLoss expects boolean label. Got '{label.dtype}'.")
    if pred.dtype == jnp.bool_:
        raise ValueError("Pred should have float type, not bool.")
    if sc_channel is not None:
        # TODO(synk): sc_channel path needs per-batch argwhere/min-z cropping
        # (data-dependent shapes); no clean static-shape Pallas equivalent.
        raise NotImplementedError("sc_channel path not implemented")

    if label.shape != pred.shape:
        if label.shape != (pred.shape[0], *pred.shape[2:]):
            raise ValueError(
                "FocalLoss expects label to be one-hot-encoded and match "
                "prediction shape, or categorical and match on all dimensions "
                "except channels.")
        # Original hard-codes num_classes=2; generalised to C (identical when
        # C == 2, the only case the original supports).  Built as a fused
        # compare so no float one_hot / moveaxis copy ever hits HBM.
        cls = label.astype(jnp.int32)
        ch = jnp.arange(pred.shape[1], dtype=jnp.int32).reshape(
            (1, pred.shape[1]) + (1,) * (label.ndim - 1))
        label = cls[:, None] == ch  # bool (B, C, spatial...)
    if mask is not None:
        assert mask.shape == pred.shape[:2]
    if weights is not None:
        assert weights.shape == pred.shape[:2]
        # TODO(synk): the original raises if per-batch weights don't sum to 1;
        # a data-dependent raise is not expressible under jit, so it's skipped.
    assert reduction in ("mean", "sum")

    b, c = pred.shape[0], pred.shape[1]
    n = math.prod(pred.shape[2:])
    assert n > 0
    bc = b * c

    # Fold spatial into sublanes when B*C < 8 so every (8,128) vreg carries
    # useful rows; the per-(b,c) sums stay exact (recombined in the epilogue).
    r = 1
    if bc < 8:
        for cand in range(min(8 // bc, max(1, n // _LANES)), 0, -1):
            if n % cand == 0:
                r = cand
                break
    rows, n_fold = bc * r, n // r

    # pred stays in its native dtype; label travels as int8 (1 B/voxel).
    # TODO(synk): shipping the bool label directly (no int8 cast pass) would
    # save one HBM pass if/when bool refs lower cleanly in Mosaic.
    pred2d = pred.reshape(rows, n_fold)
    label2d = label.astype(jnp.int8).reshape(rows, n_fold)

    sums = _focal_channel_sums(pred2d, label2d, epsilon,
                               max_tile_lanes=max_tile_lanes)
    loss = sums.reshape(b, c, r).sum(axis=2)

    if mask is not None:
        loss = mask.astype(loss.dtype) * loss
    if weights is not None:
        loss = weights.astype(loss.dtype) * loss

    dim = (0, 1) if reduce_channels else 0
    if not include_background:
        loss = loss[:, 1:]
    if reduction == "mean":
        loss = loss.mean(axis=dim)
    else:
        loss = loss.sum(axis=dim)
    loss = loss / n
    return loss


def _reference_focal_loss(pred, label, include_background=True, mask=None,
                          weights=None, reduce_channels=True, reduction="mean",
                          epsilon=1e-6):
    b, c = pred.shape[0], pred.shape[1]
    if label.shape != pred.shape:
        lab = jax.nn.one_hot(label.astype(jnp.int32), c, dtype=jnp.float32)
        lab = jnp.moveaxis(lab, -1, 1)
    else:
        lab = label.astype(jnp.float32)
    p = pred.astype(jnp.float32).reshape(b, c, -1)
    l = lab.reshape(b, c, -1)
    loss = (-(1.0 - p) ** 2 * jnp.log(p + epsilon) * l).sum(axis=2)
    if mask is not None:
        loss = mask.astype(loss.dtype) * loss
    if weights is not None:
        loss = weights.astype(loss.dtype) * loss
    dim = (0, 1) if reduce_channels else 0
    if not include_background:
        loss = loss[:, 1:]
    loss = loss.mean(axis=dim) if reduction == "mean" else loss.sum(axis=dim)
    return loss / p.shape[2]


if __name__ == "__main__":
    key = jax.random.PRNGKey(0)

    def make_inputs(k, shape, dtype=jnp.float32):
        B, C = shape[0], shape[1]
        kp, kl = jax.random.split(k)
        logits = jax.random.normal(kp, shape, dtype=jnp.float32)
        pred = jax.nn.softmax(logits, axis=1).astype(dtype)
        cat = jax.random.randint(kl, (B,) + tuple(shape[2:]), 0, C)
        label = jnp.moveaxis(jax.nn.one_hot(cat, C) > 0.5, -1, 1)  # bool one-hot
        return pred, label, cat

    cases = [
        # (shape, pred dtype, max_tile_lanes, categorical label?)
        ((2, 4, 8, 8, 8),    jnp.float32,  None, False),  # aligned, bc=8
        ((2, 4, 24, 25, 17), jnp.float32,  None, False),  # in-kernel tail masking
        ((2, 4, 8, 8, 8),    jnp.float32,  128,  False),  # forced multi-step accum
        ((1, 2, 16, 16, 8),  jnp.float32,  None, False),  # sublane fold (r=4)
        ((2, 4, 8, 8, 8),    jnp.bfloat16, None, False),  # native bf16 pred path
        ((1, 3, 10, 10, 4),  jnp.float32,  None, False),  # odd bc fold + tail mask
        ((1, 8, 13, 10, 10), jnp.float32,  None, False),  # clamped overrun blocks
        ((1, 2, 8, 8, 8),    jnp.float32,  None, True),   # categorical bool labels
    ]
    for idx, (shape, dt, tile, categorical) in enumerate(cases):
        key, sub = jax.random.split(key)
        pred, label_oh, cat = make_inputs(sub, shape, dt)
        label = cat.astype(jnp.bool_) if categorical else label_oh
        out = jax.block_until_ready(focal_loss(pred, label, max_tile_lanes=tile))
        ref = jax.block_until_ready(_reference_focal_loss(pred, label))
        assert jnp.allclose(out, ref, rtol=3e-5, atol=1e-6), (idx, out, ref)

    # Non-default reduction / mask / weights / background handling.
    key, sub = jax.random.split(key)
    pred, label, _ = make_inputs(sub, (2, 4, 8, 8, 8))
    mask = jnp.array([[1.0, 1.0, 0.0, 1.0], [1.0, 0.0, 1.0, 1.0]], jnp.float32)
    weights = jnp.array([[0.1, 0.2, 0.3, 0.4], [0.25, 0.25, 0.25, 0.25]],
                        jnp.float32)
    kw = dict(include_background=False, reduce_channels=False, reduction="sum",
              mask=mask, weights=weights)
    out = jax.block_until_ready(focal_loss(pred, label, **kw))
    ref = jax.block_until_ready(_reference_focal_loss(pred, label, **kw))
    assert jnp.allclose(out, ref, rtol=3e-5, atol=1e-6), (out, ref)

    print("KERNEL_OK")
</pallas_src>

<mosaic_0001>
module attributes {stable_mosaic.version = 11 : i64} {
  func.func @_focal_sum_kernel(%arg0: i32, %arg1: i32, %arg2: memref<8x128xf32, #tpu.memory_space<vmem>>, %arg3: memref<8x128xi8, #tpu.memory_space<vmem>>, %arg4: memref<8x128xf32, #tpu.memory_space<vmem>>) attributes {dimension_semantics = [#tpu.dimension_semantics<parallel>, #tpu.dimension_semantics<arbitrary>], iteration_bounds = array<i64: 2, 2>, scalar_prefetch = 0 : i64, scratch_operands = 0 : i64, tpu.core_type = #tpu.core_type<tc>, window_params = [{transform_indices = @transform_0, window_bounds = array<i64: 8, 128>}, {transform_indices = @transform_1, window_bounds = array<i64: 8, 128>}, {transform_indices = @transform_2, window_bounds = array<i64: 8, 128>}]} {
    %c0_i32 = arith.constant 0 : i32
    %0 = arith.cmpi eq, %arg1, %c0_i32 : i32
    %1 = arith.extui %0 : i1 to i32
    %c0_i32_0 = arith.constant 0 : i32
    %2 = arith.cmpi ne, %1, %c0_i32_0 : i32
    scf.if %2 {
      %cst_11 = arith.constant 0.000000e+00 : f32
      %30 = vector.broadcast %cst_11 : f32 to vector<8x128xf32>
      %c0_12 = arith.constant 0 : index
      %c0_13 = arith.constant 0 : index
      %31 = vector.load %arg4[%c0_12, %c0_13] : memref<8x128xf32, #tpu.memory_space<vmem>>, vector<8x128xf32>
      tpu.vector_store %arg4[%c0_12, %c0_13], %30 {strides = array<i32>} : memref<8x128xf32, #tpu.memory_space<vmem>>, vector<8x128xf32>,
    } else {
    }
    %c0 = arith.constant 0 : index
    %c0_1 = arith.constant 0 : index
    %3 = vector.load %arg2[%c0, %c0_1] : memref<8x128xf32, #tpu.memory_space<vmem>>, vector<8x128xf32>
    %cst = arith.constant 1.000000e+00 : f32
    %4 = vector.broadcast %cst : f32 to vector<8x128xf32>
    %5 = arith.subf %4, %3 : vector<8x128xf32>
    %6 = arith.mulf %5, %5 : vector<8x128xf32>
    %cst_2 = arith.constant 0.000000e+00 : f32
    %7 = vector.broadcast %cst_2 : f32 to vector<8x128xf32>
    %8 = arith.subf %7, %6 : vector<8x128xf32>
    %cst_3 = arith.constant 9.99999997E-7 : f32
    %9 = vector.broadcast %cst_3 : f32 to vector<8x128xf32>
    %10 = arith.addf %3, %9 : vector<8x128xf32>
    %11 = math.log %10 : vector<8x128xf32>
    %12 = arith.mulf %8, %11 : vector<8x128xf32>
    %c2_i32 = arith.constant 2 : i32
    %13 = arith.muli %arg0, %c2_i32 : i32
    %14 = arith.addi %13, %arg1 : i32
    %c128_i32 = arith.constant 128 : i32
    %15 = arith.muli %14, %c128_i32 : i32
    %16 = tpu.iota {dimensions = array<i32: 1>} : vector<8x128xi32>
    %c0_4 = arith.constant 0 : index
    %c0_5 = arith.constant 0 : index
    %17 = vector.load %arg3[%c0_4, %c0_5] : memref<8x128xi8, #tpu.memory_space<vmem>>, vector<8x128xi8>
    %c0_i8 = arith.constant 0 : i8
    %18 = vector.broadcast %c0_i8 : i8 to vector<8x128xi8>
    %19 = arith.cmpi ne, %17, %18 : vector<8x128xi8>
    %20 = vector.broadcast %15 : i32 to vector<8x128xi32>
    %21 = arith.addi %20, %16 : vector<8x128xi32>
    %c512_i32 = arith.constant 512 : i32
    %22 = vector.broadcast %c512_i32 : i32 to vector<8x128xi32>
    %23 = arith.cmpi slt, %21, %22 : vector<8x128xi32>
    %24 = arith.andi %19, %23 : vector<8x128xi1>
    %cst_6 = arith.constant 0.000000e+00 : f32
    %25 = vector.broadcast %cst_6 : f32 to vector<8x128xf32>
    %26 = arith.select %24, %12, %25 : vector<8x128xi1>, vector<8x128xf32>
    %c0_7 = arith.constant 0 : index
    %c0_8 = arith.constant 0 : index
    %27 = vector.load %arg4[%c0_7, %c0_8] : memref<8x128xf32, #tpu.memory_space<vmem>>, vector<8x128xf32>
    %28 = arith.addf %27, %26 : vector<8x128xf32>
    %c0_9 = arith.constant 0 : index
    %c0_10 = arith.constant 0 : index
    %29 = vector.load %arg4[%c0_9, %c0_10] : memref<8x128xf32, #tpu.memory_space<vmem>>, vector<8x128xf32>
    tpu.vector_store %arg4[%c0_9, %c0_10], %28 {strides = array<i32>} : memref<8x128xf32, #tpu.memory_space<vmem>>, vector<8x128xf32>,
    return
  }
  func.func @transform_0(%arg0: i32, %arg1: i32) -> (i32, i32) {
    %c2_i32 = arith.constant 2 : i32
    %0 = arith.muli %arg0, %c2_i32 : i32
    %1 = arith.addi %0, %arg1 : i32
    %c3_i32 = arith.constant 3 : i32
    %2 = arith.minsi %1, %c3_i32 : i32
    %c0_i32 = arith.constant 0 : i32
    %c0_i32_0 = arith.constant 0 : i32
    return %c0_i32, %2 : i32, i32
  }
  func.func @transform_1(%arg0: i32, %arg1: i32) -> (i32, i32) {
    %c2_i32 = arith.constant 2 : i32
    %0 = arith.muli %arg0, %c2_i32 : i32
    %1 = arith.addi %0, %arg1 : i32
    %c3_i32 = arith.constant 3 : i32
    %2 = arith.minsi %1, %c3_i32 : i32
    %c0_i32 = arith.constant 0 : i32
    %c0_i32_0 = arith.constant 0 : i32
    return %c0_i32, %2 : i32, i32
  }
  func.func @transform_2(%arg0: i32, %arg1: i32) -> (i32, i32) {
    %c0_i32 = arith.constant 0 : i32
    %c0_i32_0 = arith.constant 0 : i32
    return %c0_i32, %arg0 : i32, i32
  }
}

</mosaic_0001>

<llo_original>
// kernel: tpu_custom_call.1
$region0: #{tpu_custom_call.1}
  #allocation0 [shape = 'u32[]', space=smem, size = 0x4, offset = 0x4, fixed_abs, tag = 'smem constant byte address 0x4 - core index']
  #allocation1 [shape = 'u32[72,128]{1,0:T(1,128)}', space=vmem, size = 0x9000, scoped, tag = 'internal scratch']
  %s0 = inlined_call_operand.hbm [shape: f32[8,512], index: 0, kind: input, shape index: {}]
  %s1 = inlined_call_operand.hbm [shape: s8[8,512], index: 1, kind: input, shape index: {}]
  %s2 = inlined_call_operand.hbm [shape: f32[8,256], index: 2, kind: output, shape index: {}]
  %s3 = sld [smem:[#allocation0]]
  $region53: #{tpu_custom_call.1} parent=0
    _
  %s5 = ssub.s32 1, %s3
  %s6 = scalar_select 0, %s5, %s3
  $region1: #{tpu_custom_call.1} parent=0
    #allocation2 [shape = 'u8[8192]{0}', space=vmem, size = 0x2000, scoped, tag = 'input window, operand 0']
    #allocation3 [shape = 's32[2]{0}', space=sflag, size = 0x8, scoped, tag = 'scoped memory for tpu_custom_call.1']
    #allocation4 [shape = 's32[2]{0}', space=sflag, size = 0x8, scoped, tag = 'scoped memory for tpu_custom_call.1']
    #allocation5 [shape = 'u8[2048]{0}', space=vmem, size = 0x800, scoped, tag = 'input window, operand 1']
    #allocation6 [shape = 's32[2]{0}', space=sflag, size = 0x8, scoped, tag = 'scoped memory for tpu_custom_call.1']
    #allocation7 [shape = 'u8[8192]{0}', space=vmem, size = 0x2000, scoped, tag = 'output window, operand 0']
    %7 = vsyncpa [#allocation3], 0
    %s8 = scalar_lea.sflag [#allocation3], 1
    %9 = vsyncpa %s8, 0
    %10 = vsyncpa [#allocation6], 0
    %s11 = scalar_lea.sflag [#allocation6], 1
    %12 = vsyncpa %s11, 0
    %13 = vsyncpa [#allocation4], 0
    %s14 = scalar_lea.sflag [#allocation4], 1
    %15 = vsyncpa %s14, 0
    loop: start=0, step=1, limit=6
    $region2: #{tpu_custom_call.1} parent=1 // loop_pre_header
      _
    $region3: #{tpu_custom_call.1} parent=1 // loop_header
      %s17 = sphi 0, %s21
      %p18 = scmp.ge.s32.totalorder %s17, 6
      %s24 = sphi 0, %s36
      %s25 = sphi 0, %s32
      %s26 = sphi 0, %s24
      %s27 = sphi 0, %s25
      %s28 = sphi 0, %s26
      %s29 = sphi 0, %s27
      %s47 = sphi 0, %s49
      %s50 = sphi 0, %s47
      %s51 = sphi 0, %s50
      %s67 = sphi 0, %s51
      %s81 = sphi 0, %s83
      %s84 = sphi 0, %s81
      %s85 = sphi 0, %s84
      %s101 = sphi 0, %s85
      %s107 = sphi 0, %s109
      %s110 = sphi 0, %s107
      %s111 = sphi 0, %s110
      %s127 = sphi 0, %s111
    $region4: #{tpu_custom_call.1} parent=1 // loop_header_branch
      %20 = sbr.rel (%p18) target = $region8
    $region5: #{tpu_custom_call.1} parent=1 // loop_body
      %s22 = ssub.s32 %s17, 1
      %s23 = ssub.s32 %s17, 2
      %s30 = sadd.s32 1, %s25
      %p31 = scmp.ge.s32.totalorder %s30, 2
      %s32 = scalar_select %p31, 0, %s30
      %s33 = sadd.s32 1, %s24
      %s34 = scalar_select %p31, %s33, %s24
      %p35 = scmp.ge.s32.totalorder %s34, 2
      %s36 = scalar_select %p35, 0, %s34
      %s37 = smul.u32 %s24, 2
      %s38 = sadd.s32 %s37, %s25
      %p39 = scmp.lt.s32.totalorder %s38, 3
      %s40 = scalar_select %p39, %s38, 3
      %s41 = smul.u32 %s36, 2
      %s42 = sadd.s32 %s41, %s32
      %p43 = scmp.lt.s32.totalorder %s42, 3
      %s44 = scalar_select %p43, %s42, 3
      %s45 = ssub.s32 %s40, %s44
      %p46 = scmp.eq.s32.totalorder %s45, 0
      %s48 = sadd.s32 %s47, 1
      %s49 = scalar_select %p46, %s47, %s48
      %p52 = pneg %p46
      %p53 = scmp.eq.s32.totalorder %s17, 3
      %p54 = por %p52, %p53
      %p55 = scmp.ne.s32.totalorder %s47, %s50
      %p56 = scmp.eq.s32.totalorder %s17, 0
      %p57 = por %p55, %p56
      %p58 = scmp.ne.s32.totalorder %s47, %s50
      %p59 = scmp.eq.s32.totalorder %s22, 3
      %p60 = por %p58, %p59
      %p61 = scmp.ne.s32.totalorder %s50, %s51
      %p62 = scmp.eq.s32.totalorder %s22, 0
      %p63 = por %p61, %p62
      %p64 = scmp.ne.s32.totalorder %s50, %s51
      %p65 = scmp.eq.s32.totalorder %s23, 3
      %p66 = por %p64, %p65
      %p68 = scmp.ne.s32.totalorder %s51, %s67
      %p69 = scmp.eq.s32.totalorder %s23, 0
      %p70 = por %p68, %p69
      %s71 = smul.u32 %s24, 2
      %s72 = sadd.s32 %s71, %s25
      %p73 = scmp.lt.s32.totalorder %s72, 3
      %s74 = scalar_select %p73, %s72, 3
      %s75 = smul.u32 %s36, 2
      %s76 = sadd.s32 %s75, %s32
      %p77 = scmp.lt.s32.totalorder %s76, 3
      %s78 = scalar_select %p77, %s76, 3
      %s79 = ssub.s32 %s74, %s78
      %p80 = scmp.eq.s32.totalorder %s79, 0
      %s82 = sadd.s32 %s81, 1
      %s83 = scalar_select %p80, %s81, %s82
      %p86 = pneg %p80
      %p87 = scmp.eq.s32.totalorder %s17, 3
      %p88 = por %p86, %p87
      %p89 = scmp.ne.s32.totalorder %s81, %s84
      %p90 = scmp.eq.s32.totalorder %s17, 0
      %p91 = por %p89, %p90
      %p92 = scmp.ne.s32.totalorder %s81, %s84
      %p93 = scmp.eq.s32.totalorder %s22, 3
      %p94 = por %p92, %p93
      %p95 = scmp.ne.s32.totalorder %s84, %s85
      %p96 = scmp.eq.s32.totalorder %s22, 0
      %p97 = por %p95, %p96
      %p98 = scmp.ne.s32.totalorder %s84, %s85
      %p99 = scmp.eq.s32.totalorder %s23, 3
      %p100 = por %p98, %p99
      %p102 = scmp.ne.s32.totalorder %s85, %s101
      %p103 = scmp.eq.s32.totalorder %s23, 0
      %p104 = por %p102, %p103
      %s105 = ssub.s32 %s24, %s36
      %p106 = scmp.eq.s32.totalorder %s105, 0
      %s108 = sadd.s32 %s107, 1
      %s109 = scalar_select %p106, %s107, %s108
      %p112 = pneg %p106
      %p113 = scmp.eq.s32.totalorder %s17, 3
      %p114 = por %p112, %p113
      %p115 = scmp.ne.s32.totalorder %s107, %s110
      %p116 = scmp.eq.s32.totalorder %s17, 0
      %p117 = por %p115, %p116
      %p118 = scmp.ne.s32.totalorder %s107, %s110
      %p119 = scmp.eq.s32.totalorder %s22, 3
      %p120 = por %p118, %p119
      %p121 = scmp.ne.s32.totalorder %s110, %s111
      %p122 = scmp.eq.s32.totalorder %s22, 0
      %p123 = por %p121, %p122
      %p124 = scmp.ne.s32.totalorder %s110, %s111
      %p125 = scmp.eq.s32.totalorder %s23, 3
      %p126 = por %p124, %p125
      %p128 = scmp.ne.s32.totalorder %s111, %s127
      %p129 = scmp.eq.s32.totalorder %s23, 0
      %p130 = por %p128, %p129
      %p131 = scmp.le.s32.totalorder 1, %s17
      %p132 = scmp.lt.s32.totalorder %s17, 5
      %p133 = pnand %p131, %p132
      %p134 = pneg %p133
      // Predicated region
      $region9: #{tpu_custom_call.1} parent=5 // pred_check
        _
      $region10: #{tpu_custom_call.1} parent=5 // pred_check_branch
        %136 = sbr.rel (%p133) target = $region12
      $region11: #{tpu_custom_call.1} parent=5 // pred_region
        %s137 = ssub.s32 %s17, 1
      $region12: #{tpu_custom_call.1} parent=5 // pred_fallthru
        _
      %p138 = scmp.lt.s32.totalorder %s17, 4
      // Predicated region
      $region13: #{tpu_custom_call.1} parent=5 // pred_check
        %p139 = pneg %p138
      $region14: #{tpu_custom_call.1} parent=5 // pred_check_branch
        %141 = sbr.rel (%p139) target = $region16
      $region15: #{tpu_custom_call.1} parent=5 // pred_region
        // Predicated region
        $region17: #{tpu_custom_call.1} parent=15 // pred_check
          %p142 = pneg %p57
        $region18: #{tpu_custom_call.1} parent=15 // pred_check_branch
          %144 = sbr.rel (%p142) target = $region20
        $region19: #{tpu_custom_call.1} parent=15 // pred_region
          %s145 = sand.u32 %s47, 1
          %s146 = scalar_lea.sflag [#allocation3], %s145
          %s147 = sand.u32 %s47, 1
          %s148 = smul.addr %s147, 8
          %s149 = scalar_lea.vmem [#allocation2], %s148
          %s150 = smul.u32 %s24, 2
          %s151 = sadd.s32 %s150, %s25
          %p152 = scmp.lt.s32.totalorder %s151, 3
          %s153 = scalar_select %p152, %s151, 3
          %155 = vsyncadd %s146, 0
          %s156 = smul.addr %s153, 8
          %s157 = scalar_lea.hbm %s0, %s156
          %s159 = sshll.u32 %s157, 4
          %s160 = int_to_ptr.hbm [resolvable:$true] %s159
          %s161 = sshll.u32 %s149, 4
          %s162 = int_to_ptr.vmem [resolvable:$true] %s161
          %164 = dma.hbm_to_vmem [thread:$0]  %s160, 128, %s162, %s146
        $region20: #{tpu_custom_call.1} parent=15 // pred_fallthru
          _
        // Predicated region
        $region21: #{tpu_custom_call.1} parent=15 // pred_check
          %p165 = pneg %p91
        $region22: #{tpu_custom_call.1} parent=15 // pred_check_branch
          %167 = sbr.rel (%p165) target = $region24
        $region23: #{tpu_custom_call.1} parent=15 // pred_region
          %s168 = sand.u32 %s81, 1
          %s169 = scalar_lea.sflag [#allocation6], %s168
          %s170 = sand.u32 %s81, 1
          %s171 = smul.addr %s170, 2
          %s172 = scalar_lea.vmem [#allocation5], %s171
          %s173 = smul.u32 %s24, 2
          %s174 = sadd.s32 %s173, %s25
          %p175 = scmp.lt.s32.totalorder %s174, 3
          %s176 = scalar_select %p175, %s174, 3
          %178 = vsyncadd %s169, 0
          %s179 = smul.addr %s176, 2
          %s180 = scalar_lea.hbm %s1, %s179
          %s182 = sshll.u32 %s180, 4
          %s183 = int_to_ptr.hbm [resolvable:$true] %s182
          %s184 = sshll.u32 %s172, 4
          %s185 = int_to_ptr.vmem [resolvable:$true] %s184
          %187 = dma.hbm_to_vmem [thread:$0]  %s183, 32, %s185, %s169
        $region24: #{tpu_custom_call.1} parent=15 // pred_fallthru
          _
      $region16: #{tpu_custom_call.1} parent=5 // pred_fallthru
        _
      %p188 = scmp.le.s32.totalorder 1, %s17
      %p189 = scmp.lt.s32.totalorder %s17, 5
      %p190 = pnand %p188, %p189
      %p191 = pneg %p190
      // Predicated region
      $region25: #{tpu_custom_call.1} parent=5 // pred_check
        _
      $region26: #{tpu_custom_call.1} parent=5 // pred_check_branch
        %193 = sbr.rel (%p190) target = $region28
      $region27: #{tpu_custom_call.1} parent=5 // pred_region
        %s194 = ssub.s32 %s17, 1
        %s195 = sand.u32 %s50, 1
        %s196 = scalar_lea.sflag [#allocation3], %s195
        %s197 = sand.u32 %s50, 1
        %s198 = smul.addr %s197, 8
        %s199 = scalar_lea.vmem [#allocation2], %s198
        // Predicated region
        $region29: #{tpu_custom_call.1} parent=27 // pred_check
          %p200 = pneg %p63
        $region30: #{tpu_custom_call.1} parent=27 // pred_check_branch
          %202 = sbr.rel (%p200) target = $region32
        $region31: #{tpu_custom_call.1} parent=27 // pred_region
          %204 = dma.done %s196, 128
        $region32: #{tpu_custom_call.1} parent=27 // pred_fallthru
          _
        %s205 = sand.u32 %s84, 1
        %s206 = scalar_lea.sflag [#allocation6], %s205
        %s207 = sand.u32 %s84, 1
        %s208 = smul.addr %s207, 2
        %s209 = scalar_lea.vmem [#allocation5], %s208
        // Predicated region
        $region33: #{tpu_custom_call.1} parent=27 // pred_check
          %p210 = pneg %p97
        $region34: #{tpu_custom_call.1} parent=27 // pred_check_branch
          %212 = sbr.rel (%p210) target = $region36
        $region35: #{tpu_custom_call.1} parent=27 // pred_region
          %214 = dma.done %s206, 32
        $region36: #{tpu_custom_call.1} parent=27 // pred_fallthru
          _
        %s215 = sand.u32 %s50, 1
        %s216 = scalar_lea.sflag [#allocation3], %s215
        %s217 = sand.u32 %s50, 1
        %s218 = smul.addr %s217, 8
        %s219 = scalar_lea.vmem [#allocation2], %s218
        %p220 = pneg %p63
        %p221 = pneg %p60
        %s222 = sand.u32 %s84, 1
        %s223 = scalar_lea.sflag [#allocation6], %s222
        %s224 = sand.u32 %s84, 1
        %s225 = smul.addr %s224, 2
        %s226 = scalar_lea.vmem [#allocation5], %s225
        %p227 = pneg %p97
        %p228 = pneg %p94
        %p229 = pneg %p123
        %p230 = pneg %p120
        %s231 = sand.u32 %s110, 1
        %s232 = scalar_lea.sflag [#allocation4], %s231
        %s233 = sand.u32 %s110, 1
        %s234 = smul.addr %s233, 8
        %s235 = scalar_lea.vmem [#allocation7], %s234
        %s236 = smul.u32 %s26, 2
        %s237 = sadd.s32 %s236, %s27
        %p238 = scmp.lt.s32.totalorder %s237, 3
        %s239 = scalar_select %p238, %s237, 3
        %s240 = smul.u32 %s26, 2
        %s241 = sadd.s32 %s240, %s27
        %p242 = scmp.lt.s32.totalorder %s241, 3
        %s243 = scalar_select %p242, %s241, 3
        %p246 = scmp.eq.s32.totalorder %s27, 0
        // Predicated region
        $region37: #{tpu_custom_call.1} parent=27 // pred_check
          %p247 = pneg %p246
        $region38: #{tpu_custom_call.1} parent=27 // pred_check_branch
          %249 = sbr.rel (%p247) target = $region40
        $region39: #{tpu_custom_call.1} parent=27 // pred_region
          %250 = vst [vmem:[%s235] sm:$0xff] 0.0
        $region40: #{tpu_custom_call.1} parent=27 // pred_fallthru
          _
        %v251 = vld [vmem:[%s199] sm:$0xff]
        %v252 = vsub.f32 1.0, %v251
        %v253 = vmul.f32 %v252, %v252
        %v254 = vsub.f32 0.0, %v253
        %v255 = vadd.f32 %v251, 1e-06
        %v256 = vlog2.pop %v255
        %v257 = vmul.f32 %v256, 0.6931472
        %v258 = vmul.f32 %v254, %v257
        %s259 = smul.u32 %s26, 2
        %s260 = sadd.s32 %s259, %s27
        %s261 = smul.u32 %s260, 128
        %v262 = vlaneseq
        %v263 = vand.u32 %v262, 127
        %v264 = vld [vmem:[%s209] sm:$0x3]
        %vm265 = vnez %v264
        %v266 = vstv %s261
        %v267 = vadd.s32 %v266, %v263
        %vm268 = vcmp.lt.s32.totalorder %v267, 512
        %vm269 = vmpackc.low %vm268, %vm268
        %v270 = vsel %vm269, 16711935, 0
        %v271 = vsel %vm269, 16711935, 0
        %v272 = vpack.c.b8 %v271, %v270
        %vm273 = vnez %v272
        %vm274 = vmand %vm265, %vm273
        %v275 = vsel %vm274, 16843009, 0
        %v276 = vunpack.c.0.s8 %v275
        %vm277 = vcmp.ne.s32.totalorder %v276, 0
        %v278 = vsel %vm277, %v258, 0.0
        %v279 = vld [vmem:[%s235] sm:$0xff]
        %v280 = vadd.f32 %v279, %v278
        %281 = vst [vmem:[%s235] sm:$0xff] %v280
        %s282 = sand.u32 %s110, 1
        %s283 = scalar_lea.sflag [#allocation4], %s282
        %s284 = sand.u32 %s110, 1
        %s285 = smul.addr %s284, 8
        %s286 = scalar_lea.vmem [#allocation7], %s285
        // Predicated region
        $region41: #{tpu_custom_call.1} parent=27 // pred_check
          %p287 = pneg %p120
        $region42: #{tpu_custom_call.1} parent=27 // pred_check_branch
          %289 = sbr.rel (%p287) target = $region44
        $region43: #{tpu_custom_call.1} parent=27 // pred_region
          %291 = vsyncadd %s283, 0
          %s292 = smul.addr %s26, 8
          %s293 = scalar_lea.hbm %s2, %s292
          %s295 = sshll.u32 %s286, 4
          %s296 = int_to_ptr.vmem [resolvable:$true] %s295
          %s297 = sshll.u32 %s293, 4
          %s298 = int_to_ptr.hbm [resolvable:$true] %s297
          %300 = dma.vmem_to_hbm [thread:$0]  %s296, 128, %s298, %s283
        $region44: #{tpu_custom_call.1} parent=27 // pred_fallthru
          _
      $region28: #{tpu_custom_call.1} parent=5 // pred_fallthru
        _
      %p301 = scmp.le.s32.totalorder 2, %s17
      // Predicated region
      $region45: #{tpu_custom_call.1} parent=5 // pred_check
        %p302 = pneg %p301
      $region46: #{tpu_custom_call.1} parent=5 // pred_check_branch
        %304 = sbr.rel (%p302) target = $region48
      $region47: #{tpu_custom_call.1} parent=5 // pred_region
        %s305 = ssub.s32 %s17, 2
        // Predicated region
        $region49: #{tpu_custom_call.1} parent=47 // pred_check
          %p306 = pneg %p126
        $region50: #{tpu_custom_call.1} parent=47 // pred_check_branch
          %308 = sbr.rel (%p306) target = $region52
        $region51: #{tpu_custom_call.1} parent=47 // pred_region
          %s309 = sand.u32 %s111, 1
          %s310 = scalar_lea.sflag [#allocation4], %s309
          %s311 = sand.u32 %s111, 1
          %s312 = smul.addr %s311, 8
          %s313 = scalar_lea.vmem [#allocation7], %s312
          %315 = dma.done %s310, 128
        $region52: #{tpu_custom_call.1} parent=47 // pred_fallthru
          _
      $region48: #{tpu_custom_call.1} parent=5 // pred_fallthru
        _
    $region6: #{tpu_custom_call.1} parent=1 // loop_footer
      %s21 = sadd.s32 1, %s17
    $region7: #{tpu_custom_call.1} parent=1 // loop_footer_branch
      %16 = sbr.rel target = $region3
    $region8: #{tpu_custom_call.1} parent=1 // loop_exit
      _
    %316 = vsyncpa [#allocation3], 1
    %s317 = scalar_lea.sflag [#allocation3], 1
    %318 = vsyncpa %s317, 1
    %319 = vsyncpa [#allocation6], 1
    %s320 = scalar_lea.sflag [#allocation6], 1
    %321 = vsyncpa %s320, 1
    %322 = vsyncpa [#allocation4], 1
    %s323 = scalar_lea.sflag [#allocation4], 1
    %324 = vsyncpa %s323, 1

</llo_original>
